<compile_context>
chip_gen: v5e
topology: v5e:2x2
jax: 0.10.0
libtpu: 0.0.40
codegen_flags: <defaults>
</compile_context>

<pallas_src>
import functools

import numpy as np
import jax
import jax.numpy as jnp
from jax import lax
from jax.experimental import pallas as pl
from jax.experimental.pallas import tpu as pltpu


def _embed_onehot_kernel(ids_ref, table_ref, out_ref):
    # ids_ref:   (T, 1) int32 VMEM tile of flat token ids for this token tile.
    # table_ref: (V, D) VMEM tile = the full embedding table (constant block
    #            index -> fetched once, VMEM-resident across all grid steps).
    # out_ref:   (T, D) VMEM tile of the output for this token tile.
    T = out_ref.shape[0]
    V = table_ref.shape[0]
    ids = ids_ref[...]                                     # (T, 1) int32
    vocab = lax.broadcasted_iota(jnp.int32, (T, V), 1)     # (T, V) column ids
    one_hot = (ids == vocab).astype(table_ref.dtype)       # (T, V) MXU lhs
    out_ref[...] = jnp.dot(
        one_hot, table_ref[...], preferred_element_type=jnp.float32
    ).astype(out_ref.dtype)


def _vmem_capacity_bytes():
    """Physical VMEM of the current chip (128 MiB v5e/v6e, 64 MiB per-TC v7x)."""
    try:
        info = pltpu.get_tpu_info()
        cap = getattr(info, "vmem_capacity_bytes", None)
        if cap:
            return int(cap)
    except Exception:
        pass
    return 64 << 20  # conservative fallback (v7x per-core VMEM)


@functools.partial(jax.jit, static_argnames=("max_tokens_per_tile",))
def embedding_lookup(ids, table, *, max_tokens_per_tile=512):
    """Pallas gather: out[b, s, :] = table[ids[b, s], :]."""
    B, S = ids.shape
    V, D = table.shape
    itemsize = jnp.dtype(table.dtype).itemsize

    # Adaptive token tile: small batches do no wasted work; large batches get
    # big lane-dense output DMAs that amortize the per-grid-step overhead.
    n_tok = B * S
    T = max(8, min(max_tokens_per_tile, ((n_tok + 7) // 8) * 8))
    n_pad = ((n_tok + T - 1) // T) * T
    n_tiles = n_pad // T

    flat_ids = ids.reshape(-1).astype(jnp.int32)
    if n_pad != n_tok:
        flat_ids = jnp.pad(flat_ids, (0, n_pad - n_tok))   # id 0 is a valid row
    ids2d = flat_ids.reshape(n_pad, 1)                      # lane-dense id blocks

    # VMEM budget -- count what the pipeline actually allocates:
    # 2 buffers per input (table + ids), 2 output buffers, the (T, V) one-hot
    # intermediate, plus compiler scratch headroom.
    table_bytes = V * D * itemsize
    out_tile_bytes = T * D * itemsize
    ids_tile_bytes = T * 4
    onehot_bytes = T * V * 4
    vmem_need = (2 * table_bytes + 2 * out_tile_bytes + 2 * ids_tile_bytes
                 + onehot_bytes + (4 << 20))
    cap = _vmem_capacity_bytes()
    assert vmem_need <= int(0.9 * cap), (
        "embedding table too large for the VMEM-resident one-hot path "
        f"({vmem_need} B needed, {cap} B VMEM); use a DMA-gather variant")
    vmem_limit = int(min(max(vmem_need, 32 << 20), cap))

    cost = pl.CostEstimate(
        flops=2 * n_pad * V * D,                 # one-hot matmul
        transcendentals=0,
        bytes_accessed=table_bytes + n_pad * 4 + n_pad * D * itemsize,
    )

    out_flat = pl.pallas_call(
        _embed_onehot_kernel,
        out_shape=jax.ShapeDtypeStruct((n_pad, D), table.dtype),
        grid_spec=pltpu.PrefetchScalarGridSpec(
            num_scalar_prefetch=0,
            grid=(n_tiles,),
            in_specs=[
                # Per-tile ids block (last dim == full array dim -> legal).
                pl.BlockSpec((T, 1), lambda i: (i, 0)),
                # Full table, constant block index -> VMEM-resident.
                pl.BlockSpec((V, D), lambda i: (0, 0)),
            ],
            out_specs=pl.BlockSpec((T, D), lambda i: (i, 0)),
        ),
        compiler_params=pltpu.CompilerParams(
            dimension_semantics=("parallel",),   # independent token tiles
            vmem_limit_bytes=vmem_limit,
        ),
        cost_estimate=cost,
    )(ids2d, table)

    if n_pad != n_tok:
        out_flat = out_flat[:n_tok]
    return out_flat.reshape(B, S, D)


def make_word_embedding_weights(key, vocab_known, n_unknown, dim):
    """Deterministic synthetic init mirroring WordEmbeddingModel.__init__ /
    make_random_model: known rows ~ U[-0.5, 0.5), unknown rows ~ U[-0.25, 0.25)."""
    k1, k2 = jax.random.split(key)
    known = jax.random.uniform(k1, (vocab_known, dim), jnp.float32) - 0.5
    unknown = jax.random.uniform(k2, (n_unknown, dim), jnp.float32) / 2.0 - 0.25
    return jnp.concatenate([known, unknown], axis=0)


if __name__ == "__main__":
    key = jax.random.PRNGKey(0)
    k_w, k_x = jax.random.split(key)

    # Small, module-consistent shapes.
    vocab_known = 20         # len(id_dict)
    n_unknown = 4            # len(unknown_vocab)
    vocab_size = vocab_known + n_unknown
    dim = 300                # module default embedding dim (not a 128 multiple)
    B, S = 2, 8              # batch of token-id sequences

    table = make_word_embedding_weights(k_w, vocab_known, n_unknown, dim)
    x = jax.random.randint(k_x, (B, S), 0, vocab_size, dtype=jnp.int32)

    out = jax.block_until_ready(embedding_lookup(x, table))
    ref = jnp.take(table, x, axis=0)
    np.testing.assert_allclose(np.asarray(out), np.asarray(ref),
                               rtol=1e-6, atol=1e-6)
    assert out.shape == (B, S, dim)

    # Second check: lane-aligned dim and a token count that is not a multiple of 8.
    dim2 = 128
    table2 = make_word_embedding_weights(k_w, vocab_known, n_unknown, dim2)
    x2 = jax.random.randint(k_x, (3, 7), 0, vocab_size, dtype=jnp.int32)
    out2 = jax.block_until_ready(embedding_lookup(x2, table2))
    np.testing.assert_allclose(np.asarray(out2),
                               np.asarray(jnp.take(table2, x2, axis=0)),
                               rtol=1e-6, atol=1e-6)

    print("KERNEL_OK")
</pallas_src>

<mosaic_0001>
module attributes {stable_mosaic.version = 11 : i64} {
  func.func @_embed_onehot_kernel(%arg0: i32, %arg1: memref<16x1xi32, #tpu.memory_space<vmem>>, %arg2: memref<24x300xf32, #tpu.memory_space<vmem>>, %arg3: memref<16x300xf32, #tpu.memory_space<vmem>>) attributes {dimension_semantics = [#tpu.dimension_semantics<parallel>], iteration_bounds = array<i64: 1>, scalar_prefetch = 0 : i64, scratch_operands = 0 : i64, tpu.core_type = #tpu.core_type<tc>, window_params = [{transform_indices = @transform_0, window_bounds = array<i64: 16, 1>}, {pipeline_mode = #tpu.pipeline_mode<synchronous>, transform_indices = @transform_1, window_bounds = array<i64: 24, 300>}, {transform_indices = @transform_2, window_bounds = array<i64: 16, 300>}]} {
    %c0 = arith.constant 0 : index
    %c0_0 = arith.constant 0 : index
    %0 = vector.load %arg1[%c0, %c0_0] : memref<16x1xi32, #tpu.memory_space<vmem>>, vector<16x1xi32>
    %1 = tpu.iota {dimensions = array<i32: 1>} : vector<16x24xi32>
    %2 = vector.broadcast %0 : vector<16x1xi32> to vector<16x24xi32>
    %3 = arith.cmpi eq, %2, %1 : vector<16x24xi32>
    %4 = arith.extui %3 : vector<16x24xi1> to vector<16x24xi32>
    %5 = arith.sitofp %4 : vector<16x24xi32> to vector<16x24xf32>
    %c0_1 = arith.constant 0 : index
    %c0_2 = arith.constant 0 : index
    %6 = vector.load %arg2[%c0_1, %c0_2] : memref<24x300xf32, #tpu.memory_space<vmem>>, vector<24x300xf32>
    %cst = arith.constant dense<0.000000e+00> : vector<16x300xf32>
    %7 = tpu.matmul %5, %6, %cst {dimension_numbers = #tpu.dot_dimension_numbers<[1], [0], [0], [1], [0, 0, 1, 1], [], []>} : vector<16x24xf32>, vector<24x300xf32>, vector<16x300xf32> -> vector<16x300xf32>
    %c0_3 = arith.constant 0 : index
    %c0_4 = arith.constant 0 : index
    %8 = vector.load %arg3[%c0_3, %c0_4] : memref<16x300xf32, #tpu.memory_space<vmem>>, vector<16x300xf32>
    tpu.vector_store %arg3[%c0_3, %c0_4], %7 {strides = array<i32>} : memref<16x300xf32, #tpu.memory_space<vmem>>, vector<16x300xf32>,
    return
  }
  func.func @transform_0(%arg0: i32) -> (i32, i32) {
    %c0_i32 = arith.constant 0 : i32
    %c0_i32_0 = arith.constant 0 : i32
    return %arg0, %c0_i32 : i32, i32
  }
  func.func @transform_1(%arg0: i32) -> (i32, i32) {
    %c0_i32 = arith.constant 0 : i32
    %c0_i32_0 = arith.constant 0 : i32
    %c0_i32_1 = arith.constant 0 : i32
    return %c0_i32, %c0_i32_0 : i32, i32
  }
  func.func @transform_2(%arg0: i32) -> (i32, i32) {
    %c0_i32 = arith.constant 0 : i32
    %c0_i32_0 = arith.constant 0 : i32
    return %arg0, %c0_i32 : i32, i32
  }
}

</mosaic_0001>

<llo_original>
// kernel: embedding_lookup.1
$region0: #{embedding_lookup.1}
  #allocation0 [shape = 'u32[]', space=smem, size = 0x4, offset = 0x4, fixed_abs, tag = 'smem constant byte address 0x4 - core index']
  #allocation1 [shape = 'u32[72,128]{1,0:T(1,128)}', space=vmem, size = 0x9000, scoped, tag = 'internal scratch']
  %s0 = inlined_call_operand.vmem [shape: s32[16,1], index: 0, kind: input, shape index: {}]
  %s1 = inlined_call_operand.hbm [shape: f32[24,300], index: 1, kind: input, shape index: {}]
  %s2 = inlined_call_operand.hbm [shape: f32[16,300], index: 2, kind: output, shape index: {}]
  %s3 = sld [smem:[#allocation0]]
  $region22: #{embedding_lookup.1} parent=0
    _
  %s5 = ssub.s32 1, %s3
  %s6 = scalar_select 0, %s5, %s3
  $region1: #{embedding_lookup.1} parent=0
    #allocation2 [shape = 'u8[36864]{0}', space=vmem, size = 0x9000, scoped, tag = 'input window, operand 1, single buffered']
    #allocation3 [shape = 's32[1]{0}', space=sflag, size = 0x4, scoped, tag = 'scoped memory for embedding_lookup.1']
    #allocation4 [shape = 's32[1]{0}', space=sflag, size = 0x4, scoped, tag = 'scoped memory for embedding_lookup.1']
    #allocation5 [shape = 'u8[24576]{0}', space=vmem, size = 0x6000, scoped, tag = 'output window, operand 0, single buffered']
    %7 = vsyncpa [#allocation3], 0
    %8 = vsyncpa [#allocation4], 0
    // Predicated region
    $region2: #{embedding_lookup.1} parent=1 // pred_check
      _
    $region3: #{embedding_lookup.1} parent=1 // pred_check_branch
      %10 = sbr.rel (0) target = $region5
    $region4: #{embedding_lookup.1} parent=1 // pred_region
      _
    $region5: #{embedding_lookup.1} parent=1 // pred_fallthru
      _
    // Predicated region
    $region6: #{embedding_lookup.1} parent=1 // pred_check
      _
    $region7: #{embedding_lookup.1} parent=1 // pred_check_branch
      %12 = sbr.rel (0) target = $region9
    $region8: #{embedding_lookup.1} parent=1 // pred_region
      %14 = vsyncadd [#allocation3], 0
      %s15 = sshll.u32 %s1, 4
      %s16 = int_to_ptr.hbm [resolvable:$true] %s15
      %s17 = sshll.u32 [#allocation2], 4
      %s18 = int_to_ptr.vmem [resolvable:$true] %s17
      %23 = dma.hbm_to_vmem [thread:$0]  %s16, 1152, %s18, [#allocation3], 384, 384, 24
    $region9: #{embedding_lookup.1} parent=1 // pred_fallthru
      _
    // Predicated region
    $region10: #{embedding_lookup.1} parent=1 // pred_check
      _
    $region11: #{embedding_lookup.1} parent=1 // pred_check_branch
      %25 = sbr.rel (0) target = $region13
    $region12: #{embedding_lookup.1} parent=1 // pred_region
      %27 = dma.done [#allocation3], 1152
    $region13: #{embedding_lookup.1} parent=1 // pred_fallthru
      _
    %v28 = vld [vmem:[%s0] sm:$0xff]
    %v29 = vld [vmem:[%s0 + $0x8] sm:$0xff]
    %v30 = vlaneseq
    %v31 = vand.u32 %v30, 127
    %32 = vset.pattern.permute.xlu0 0
    %33 = vperm.xlu0 %32, %v28
    %v34 = vpop.permute.xlu0 %33
    %35 = vset.pattern.permute.xlu0 0
    %36 = vperm.xlu0 %35, %v29
    %v37 = vpop.permute.xlu0 %36
    %vm38 = vcmp.eq.s32.totalorder %v34, %v31
    %vm39 = vcmp.eq.s32.totalorder %v37, %v31
    %v40 = vsel %vm38, 1, 0
    %v41 = vsel %vm39, 1, 0
    %v42 = vcvt.s32.f32 %v40
    %v43 = vcvt.s32.f32 %v41
    %v44 = vld [vmem:[#allocation2] sm:$0xff]
    %v45 = vld [vmem:[#allocation2 + $0x8] sm:$0xff]
    %v46 = vld [vmem:[#allocation2 + $0x10] sm:$0xff]
    %v47 = vld [vmem:[#allocation2 + $0x18] sm:$0xff]
    %v48 = vld [vmem:[#allocation2 + $0x20] sm:$0xff]
    %v49 = vld [vmem:[#allocation2 + $0x28] sm:$0xff]
    %v50 = vld [vmem:[#allocation2 + $0x30] sm:$0xff]
    %v51 = vld [vmem:[#allocation2 + $0x38] sm:$0xff]
    %v52 = vld [vmem:[#allocation2 + $0x40] sm:$0xff]
    %vm53 = vcmask 195584
    %v55 = vsel %vm53, %v42, 0
    %v58 = vsel %vm53, %v43, 0
    %60 = vmatpush.msra.mxu0 0.0
    %61 = vmatpush.msra.mxu0 0.0
    %62 = vmatpush.msra.mxu0 0.0
    %63 = vmatpush.msra.mxu0 0.0
    %64 = vmatpush.msra.mxu0 0.0
    %65 = vmatpush.msra.mxu0 0.0
    %66 = vmatpush.msra.mxu0 0.0
    %67 = vmatpush.msra.mxu0 0.0
    %68 = vmatpush.msra.mxu0 0.0
    %69 = vmatpush.msra.mxu0 0.0
    %70 = vmatpush.msra.mxu0 0.0
    %71 = vmatpush.msra.mxu0 0.0
    %72 = vmatpush.msra.mxu0 0.0
    %73 = vmatpush.msra.mxu0 %v50
    %74 = vmatpush.msra.mxu0 %v47
    %75 = vmatpush.msra.mxu0 %v44
    %76 = vmatmul.f32.gmra.mxu0 %v55
    %v77 = vpop.f32.mrf.mxu0
    %v78 = vadd.f32 0.0, %v77
    %79 = vmatmul.f32.gmra.mxu0 %v58
    %v80 = vpop.f32.mrf.mxu0
    %v81 = vadd.f32 0.0, %v80
    %82 = vdwg.mxu0
    %83 = vmatpush.msra.mxu0 0.0
    %84 = vmatpush.msra.mxu0 0.0
    %85 = vmatpush.msra.mxu0 0.0
    %86 = vmatpush.msra.mxu0 0.0
    %87 = vmatpush.msra.mxu0 0.0
    %88 = vmatpush.msra.mxu0 0.0
    %89 = vmatpush.msra.mxu0 0.0
    %90 = vmatpush.msra.mxu0 0.0
    %91 = vmatpush.msra.mxu0 0.0
    %92 = vmatpush.msra.mxu0 0.0
    %93 = vmatpush.msra.mxu0 0.0
    %94 = vmatpush.msra.mxu0 0.0
    %95 = vmatpush.msra.mxu0 0.0
    %96 = vmatpush.msra.mxu0 %v51
    %97 = vmatpush.msra.mxu0 %v48
    %98 = vmatpush.msra.mxu0 %v45
    %99 = vmatmul.f32.gmra.mxu0 %v55
    %v100 = vpop.f32.mrf.mxu0
    %v101 = vadd.f32 0.0, %v100
    %102 = vmatmul.f32.gmra.mxu0 %v58
    %v103 = vpop.f32.mrf.mxu0
    %v104 = vadd.f32 0.0, %v103
    %105 = vdwg.mxu0
    %106 = vmatpush.msra.mxu0 0.0
    %107 = vmatpush.msra.mxu0 0.0
    %108 = vmatpush.msra.mxu0 0.0
    %109 = vmatpush.msra.mxu0 0.0
    %110 = vmatpush.msra.mxu0 0.0
    %111 = vmatpush.msra.mxu0 0.0
    %112 = vmatpush.msra.mxu0 0.0
    %113 = vmatpush.msra.mxu0 0.0
    %114 = vmatpush.msra.mxu0 0.0
    %115 = vmatpush.msra.mxu0 0.0
    %116 = vmatpush.msra.mxu0 0.0
    %117 = vmatpush.msra.mxu0 0.0
    %118 = vmatpush.msra.mxu0 0.0
    %119 = vmatpush.msra.mxu0 %v52
    %120 = vmatpush.msra.mxu0 %v49
    %121 = vmatpush.msra.mxu0 %v46
    %122 = vmatmul.f32.gmra.mxu0 %v55
    %v123 = vpop.f32.mrf.mxu0
    %v124 = vadd.f32 0.0, %v123
    %125 = vmatmul.f32.gmra.mxu0 %v58
    %v126 = vpop.f32.mrf.mxu0
    %v127 = vadd.f32 0.0, %v126
    %128 = vdwg.mxu0
    %129 = vst [vmem:[#allocation5] sm:$0xff] %v78
    %130 = vst [vmem:[#allocation5 + $0x8] sm:$0xff] %v101
    %vm131 = vcmask 359424
    %132 = vst.msk [vmem:[#allocation5 + $0x10] sm:$0xff] %vm131, %v124
    %133 = vst [vmem:[#allocation5 + $0x18] sm:$0xff] %v81
    %134 = vst [vmem:[#allocation5 + $0x20] sm:$0xff] %v104
    %135 = vst.msk [vmem:[#allocation5 + $0x28] sm:$0xff] %vm131, %v127
    // Predicated region
    $region14: #{embedding_lookup.1} parent=1 // pred_check
      _
    $region15: #{embedding_lookup.1} parent=1 // pred_check_branch
      %137 = sbr.rel (0) target = $region17
    $region16: #{embedding_lookup.1} parent=1 // pred_region
      %139 = vsyncadd [#allocation4], 0
      %s140 = sshll.u32 [#allocation5], 4
      %s141 = int_to_ptr.vmem [resolvable:$true] %s140
      %s142 = sshll.u32 %s2, 4
      %s143 = int_to_ptr.hbm [resolvable:$true] %s142
      %148 = dma.vmem_to_hbm [thread:$0]  %s141, 768, %s143, [#allocation4], 384, 384, 24
    $region17: #{embedding_lookup.1} parent=1 // pred_fallthru
      _
    // Predicated region
    $region18: #{embedding_lookup.1} parent=1 // pred_check
      _
    $region19: #{embedding_lookup.1} parent=1 // pred_check_branch
      %150 = sbr.rel (0) target = $region21
    $region20: #{embedding_lookup.1} parent=1 // pred_region
      %152 = dma.done [#allocation4], 768
    $region21: #{embedding_lookup.1} parent=1 // pred_fallthru
      _
    %153 = vsyncpa [#allocation3], 1
    %154 = vsyncpa [#allocation4], 1

</llo_original>
